<compile_context>
chip_gen: v7x
topology: tpu7x:2x2x1
jax: 0.10.0
libtpu: 0.0.40
codegen_flags: <defaults>
</compile_context>

<pallas_src>
import jax
import jax.numpy as jnp
from jax.experimental import pallas as pl
from jax.experimental.pallas import tpu as pltpu

HIDDEN = 128     # hidden width fixed by the module spec
OUT_PAD = 128    # lane-dense padded output width (>= action_dim, multiple of 128)


def qnetwork_kernel(x_ref, w1_ref, w2_ref, w3_ref, b_ref, o_ref):
    # Fused MLP forward on one (TB, state_dim) row tile.
    # MXU inputs are bf16, accumulation + elementwise in f32.
    x = x_ref[...].astype(jnp.bfloat16)

    b1 = b_ref[0:1, :]          # (1, 128) f32, broadcasts over rows
    b2 = b_ref[1:2, :]
    b3 = b_ref[2:3, :]          # zero-padded past action_dim

    h1 = jnp.dot(x, w1_ref[...], preferred_element_type=jnp.float32) + b1
    h1 = jnp.maximum(h1, 0.0)

    h2 = jnp.dot(h1.astype(jnp.bfloat16), w2_ref[...],
                 preferred_element_type=jnp.float32) + b2
    h2 = jnp.maximum(h2, 0.0)

    out = jnp.dot(h2.astype(jnp.bfloat16), w3_ref[...],
                  preferred_element_type=jnp.float32) + b3
    o_ref[...] = out.astype(o_ref.dtype)


def _round_up(n, m):
    return ((n + m - 1) // m) * m


def qnetwork_forward(x, params, action_dim):
    """x: (B, state_dim) f32. params: bf16 weights (in,out) + packed f32 bias slab.

    Returns (B, action_dim) f32.
    """
    w1, w2, w3, bias = params["w1"], params["w2"], params["w3"], params["bias"]
    B, state_dim = x.shape

    # Batch tile: multiple of 8 sublanes, capped at 128 to keep live f32
    # activations (h1/h2: 2 * TB * 128 f32) well under vreg-pressure limits.
    TB = min(128, _round_up(B, 8))
    grid = (pl.cdiv(B, TB),)

    x_spec = pl.BlockSpec((TB, state_dim), lambda i: (i, 0))
    o_spec = pl.BlockSpec((TB, OUT_PAD), lambda i: (i, 0))
    # Constant index_map: weights/bias fetched once, stay resident across grid steps.
    resident = lambda a: pl.BlockSpec(a.shape, lambda i: (0, 0))

    out_padded = pl.pallas_call(
        qnetwork_kernel,
        out_shape=jax.ShapeDtypeStruct((B, OUT_PAD), jnp.float32),
        grid_spec=pltpu.PrefetchScalarGridSpec(
            num_scalar_prefetch=0,
            grid=grid,
            in_specs=[x_spec, resident(w1), resident(w2), resident(w3),
                      resident(bias)],
            out_specs=o_spec,
        ),
        compiler_params=pltpu.CompilerParams(
            dimension_semantics=("parallel",)),
    )(x, w1, w2, w3, bias)

    # Lane-dense (TB, 128) store in-kernel; cheap slice back to action_dim here.
    return out_padded[:, :action_dim]


def init_params(key, state_dim, action_dim):
    """PyTorch nn.Linear-style init (uniform +/- 1/sqrt(fan_in)).

    Weights stored transposed vs. PyTorch, i.e. (in_features, out_features),
    cast to bf16 for the MXU. w3/b3 zero-padded to OUT_PAD lane-dense columns.
    Biases packed into a single (8, OUT_PAD) f32 slab (rows 0/1/2 = b1/b2/b3).
    """
    ks = jax.random.split(key, 6)

    def unif(k, shape, fan_in):
        bound = 1.0 / jnp.sqrt(jnp.float32(fan_in))
        return jax.random.uniform(k, shape, jnp.float32, -bound, bound)

    w1 = unif(ks[0], (state_dim, HIDDEN), state_dim)
    b1 = unif(ks[1], (HIDDEN,), state_dim)
    w2 = unif(ks[2], (HIDDEN, HIDDEN), HIDDEN)
    b2 = unif(ks[3], (HIDDEN,), HIDDEN)
    w3 = unif(ks[4], (HIDDEN, action_dim), HIDDEN)
    b3 = unif(ks[5], (action_dim,), HIDDEN)

    w3_pad = jnp.zeros((HIDDEN, OUT_PAD), jnp.float32).at[:, :action_dim].set(w3)
    b3_pad = jnp.zeros((OUT_PAD,), jnp.float32).at[:action_dim].set(b3)

    bias = jnp.zeros((8, OUT_PAD), jnp.float32)
    bias = bias.at[0].set(b1).at[1].set(b2).at[2].set(b3_pad)

    return {
        "w1": w1.astype(jnp.bfloat16),
        "w2": w2.astype(jnp.bfloat16),
        "w3": w3_pad.astype(jnp.bfloat16),
        "bias": bias,
    }


def reference_forward(x, params, action_dim):
    # Mirrors the kernel's numerics: bf16 MXU inputs, f32 accumulate, f32 elementwise.
    b1 = params["bias"][0:1, :]
    b2 = params["bias"][1:2, :]
    b3 = params["bias"][2:3, :]
    h1 = jnp.maximum(
        jnp.dot(x.astype(jnp.bfloat16), params["w1"],
                preferred_element_type=jnp.float32) + b1, 0.0)
    h2 = jnp.maximum(
        jnp.dot(h1.astype(jnp.bfloat16), params["w2"],
                preferred_element_type=jnp.float32) + b2, 0.0)
    out = jnp.dot(h2.astype(jnp.bfloat16), params["w3"],
                  preferred_element_type=jnp.float32) + b3
    return out[:, :action_dim]


if __name__ == "__main__":
    key = jax.random.PRNGKey(0)
    k_params, k_x1, k_x2 = jax.random.split(key, 3)

    state_dim = 16
    action_dim = 8
    params = init_params(k_params, state_dim, action_dim)

    # Small test: single grid step.
    batch = 8
    x = jax.random.normal(k_x1, (batch, state_dim), dtype=jnp.float32)
    out = jax.block_until_ready(qnetwork_forward(x, params, action_dim))
    ref = reference_forward(x, params, action_dim)
    assert out.shape == (batch, action_dim)
    assert jnp.allclose(out, ref, atol=2e-3, rtol=2e-3)

    # Larger, non-multiple-of-tile batch: exercises the batch grid,
    # resident weights, and partial last block.
    batch2 = 200
    x2 = jax.random.normal(k_x2, (batch2, state_dim), dtype=jnp.float32)
    out2 = jax.block_until_ready(qnetwork_forward(x2, params, action_dim))
    ref2 = reference_forward(x2, params, action_dim)
    assert out2.shape == (batch2, action_dim)
    assert jnp.allclose(out2, ref2, atol=2e-3, rtol=2e-3)

    print("KERNEL_OK")
</pallas_src>

<mosaic_0001>
module attributes {stable_mosaic.version = 11 : i64} {
  func.func @qnetwork_kernel(%arg0: i32, %arg1: memref<8x16xf32, #tpu.memory_space<vmem>>, %arg2: memref<16x128xbf16, #tpu.memory_space<vmem>>, %arg3: memref<128x128xbf16, #tpu.memory_space<vmem>>, %arg4: memref<128x128xbf16, #tpu.memory_space<vmem>>, %arg5: memref<8x128xf32, #tpu.memory_space<vmem>>, %arg6: memref<8x128xf32, #tpu.memory_space<vmem>>) attributes {dimension_semantics = [#tpu.dimension_semantics<parallel>], iteration_bounds = array<i64: 1>, scalar_prefetch = 0 : i64, scratch_operands = 0 : i64, tpu.core_type = #tpu.core_type<tc>, window_params = [{transform_indices = @transform_0, window_bounds = array<i64: 8, 16>}, {pipeline_mode = #tpu.pipeline_mode<synchronous>, transform_indices = @transform_1, window_bounds = array<i64: 16, 128>}, {pipeline_mode = #tpu.pipeline_mode<synchronous>, transform_indices = @transform_2, window_bounds = array<i64: 128, 128>}, {pipeline_mode = #tpu.pipeline_mode<synchronous>, transform_indices = @transform_3, window_bounds = array<i64: 128, 128>}, {pipeline_mode = #tpu.pipeline_mode<synchronous>, transform_indices = @transform_4, window_bounds = array<i64: 8, 128>}, {transform_indices = @transform_5, window_bounds = array<i64: 8, 128>}]} {
    %c0 = arith.constant 0 : index
    %c0_0 = arith.constant 0 : index
    %0 = vector.load %arg1[%c0, %c0_0] : memref<8x16xf32, #tpu.memory_space<vmem>>, vector<8x16xf32>
    %1 = arith.truncf %0 : vector<8x16xf32> to vector<8x16xbf16>
    %c0_1 = arith.constant 0 : index
    %c0_2 = arith.constant 0 : index
    %2 = vector.load %arg5[%c0_1, %c0_2] : memref<8x128xf32, #tpu.memory_space<vmem>>, vector<1x128xf32>
    %c1 = arith.constant 1 : index
    %c0_3 = arith.constant 0 : index
    %3 = vector.load %arg5[%c1, %c0_3] : memref<8x128xf32, #tpu.memory_space<vmem>>, vector<1x128xf32>
    %c2 = arith.constant 2 : index
    %c0_4 = arith.constant 0 : index
    %4 = vector.load %arg5[%c2, %c0_4] : memref<8x128xf32, #tpu.memory_space<vmem>>, vector<1x128xf32>
    %c0_5 = arith.constant 0 : index
    %c0_6 = arith.constant 0 : index
    %5 = vector.load %arg2[%c0_5, %c0_6] : memref<16x128xbf16, #tpu.memory_space<vmem>>, vector<16x128xbf16>
    %cst = arith.constant dense<0.000000e+00> : vector<8x128xf32>
    %6 = tpu.matmul %1, %5, %cst {dimension_numbers = #tpu.dot_dimension_numbers<[1], [0], [0], [1], [0, 0, 1, 1], [], []>} : vector<8x16xbf16>, vector<16x128xbf16>, vector<8x128xf32> -> vector<8x128xf32>
    %7 = vector.broadcast %2 : vector<1x128xf32> to vector<8x128xf32>
    %8 = arith.addf %6, %7 : vector<8x128xf32>
    %cst_7 = arith.constant 0.000000e+00 : f32
    %9 = vector.broadcast %cst_7 : f32 to vector<8x128xf32>
    %10 = arith.maximumf %8, %9 : vector<8x128xf32>
    %11 = arith.truncf %10 : vector<8x128xf32> to vector<8x128xbf16>
    %c0_8 = arith.constant 0 : index
    %c0_9 = arith.constant 0 : index
    %12 = vector.load %arg3[%c0_8, %c0_9] : memref<128x128xbf16, #tpu.memory_space<vmem>>, vector<128x128xbf16>
    %cst_10 = arith.constant dense<0.000000e+00> : vector<8x128xf32>
    %13 = tpu.matmul %11, %12, %cst_10 {dimension_numbers = #tpu.dot_dimension_numbers<[1], [0], [0], [1], [0, 0, 1, 1], [], []>} : vector<8x128xbf16>, vector<128x128xbf16>, vector<8x128xf32> -> vector<8x128xf32>
    %14 = vector.broadcast %3 : vector<1x128xf32> to vector<8x128xf32>
    %15 = arith.addf %13, %14 : vector<8x128xf32>
    %cst_11 = arith.constant 0.000000e+00 : f32
    %16 = vector.broadcast %cst_11 : f32 to vector<8x128xf32>
    %17 = arith.maximumf %15, %16 : vector<8x128xf32>
    %18 = arith.truncf %17 : vector<8x128xf32> to vector<8x128xbf16>
    %c0_12 = arith.constant 0 : index
    %c0_13 = arith.constant 0 : index
    %19 = vector.load %arg4[%c0_12, %c0_13] : memref<128x128xbf16, #tpu.memory_space<vmem>>, vector<128x128xbf16>
    %cst_14 = arith.constant dense<0.000000e+00> : vector<8x128xf32>
    %20 = tpu.matmul %18, %19, %cst_14 {dimension_numbers = #tpu.dot_dimension_numbers<[1], [0], [0], [1], [0, 0, 1, 1], [], []>} : vector<8x128xbf16>, vector<128x128xbf16>, vector<8x128xf32> -> vector<8x128xf32>
    %21 = vector.broadcast %4 : vector<1x128xf32> to vector<8x128xf32>
    %22 = arith.addf %20, %21 : vector<8x128xf32>
    %c0_15 = arith.constant 0 : index
    %c0_16 = arith.constant 0 : index
    %23 = vector.load %arg6[%c0_15, %c0_16] : memref<8x128xf32, #tpu.memory_space<vmem>>, vector<8x128xf32>
    tpu.vector_store %arg6[%c0_15, %c0_16], %22 {strides = array<i32>} : memref<8x128xf32, #tpu.memory_space<vmem>>, vector<8x128xf32>,
    return
  }
  func.func @transform_0(%arg0: i32) -> (i32, i32) {
    %c0_i32 = arith.constant 0 : i32
    %c0_i32_0 = arith.constant 0 : i32
    return %arg0, %c0_i32 : i32, i32
  }
  func.func @transform_1(%arg0: i32) -> (i32, i32) {
    %c0_i32 = arith.constant 0 : i32
    %c0_i32_0 = arith.constant 0 : i32
    %c0_i32_1 = arith.constant 0 : i32
    return %c0_i32, %c0_i32_0 : i32, i32
  }
  func.func @transform_2(%arg0: i32) -> (i32, i32) {
    %c0_i32 = arith.constant 0 : i32
    %c0_i32_0 = arith.constant 0 : i32
    %c0_i32_1 = arith.constant 0 : i32
    return %c0_i32, %c0_i32_0 : i32, i32
  }
  func.func @transform_3(%arg0: i32) -> (i32, i32) {
    %c0_i32 = arith.constant 0 : i32
    %c0_i32_0 = arith.constant 0 : i32
    %c0_i32_1 = arith.constant 0 : i32
    return %c0_i32, %c0_i32_0 : i32, i32
  }
  func.func @transform_4(%arg0: i32) -> (i32, i32) {
    %c0_i32 = arith.constant 0 : i32
    %c0_i32_0 = arith.constant 0 : i32
    %c0_i32_1 = arith.constant 0 : i32
    return %c0_i32, %c0_i32_0 : i32, i32
  }
  func.func @transform_5(%arg0: i32) -> (i32, i32) {
    %c0_i32 = arith.constant 0 : i32
    %c0_i32_0 = arith.constant 0 : i32
    return %arg0, %c0_i32 : i32, i32
  }
}

</mosaic_0001>

<llo_original>
// kernel: tpu_custom_call.1
$region0: #{tpu_custom_call.1}
  #allocation0 [shape = 'u32[]', space=smem, size = 0x4, offset = 0x4, fixed_abs, tag = 'smem constant byte address 0x4 - core index']
  #allocation1 [shape = 'u32[144,128]{1,0:T(1,128)}', space=vmem, size = 0x12000, scoped, tag = 'internal scratch']
  %s0 = inlined_call_operand.hbm [shape: f32[8,16], index: 0, kind: input, shape index: {}]
  %s1 = inlined_call_operand.hbm [shape: bf16[16,128], index: 1, kind: input, shape index: {}]
  %s2 = inlined_call_operand.hbm [shape: bf16[128,128], index: 2, kind: input, shape index: {}]
  %s3 = inlined_call_operand.hbm [shape: bf16[128,128], index: 3, kind: input, shape index: {}]
  %s4 = inlined_call_operand.vmem [shape: f32[8,128], index: 4, kind: input, shape index: {}]
  %s5 = inlined_call_operand.hbm [shape: f32[8,128], index: 5, kind: output, shape index: {}]
  %s6 = sld [smem:[#allocation0]]
  $region46: #{tpu_custom_call.1} parent=0
    _
  %s8 = ssub.s32 1, %s6
  %s9 = scalar_select 0, %s8, %s6
  $region1: #{tpu_custom_call.1} parent=0
    #allocation2 [shape = 'u8[4096]{0}', space=vmem, size = 0x1000, scoped, tag = 'input window, operand 0, single buffered']
    #allocation3 [shape = 's32[1]{0}', space=sflag, size = 0x4, scoped, tag = 'scoped memory for tpu_custom_call.1']
    #allocation4 [shape = 's32[1]{0}', space=sflag, size = 0x4, scoped, tag = 'scoped memory for tpu_custom_call.1']
    #allocation5 [shape = 'u8[4096]{0}', space=vmem, size = 0x1000, scoped, tag = 'input window, operand 1, single buffered']
    #allocation6 [shape = 's32[1]{0}', space=sflag, size = 0x4, scoped, tag = 'scoped memory for tpu_custom_call.1']
    #allocation7 [shape = 'u8[32768]{0}', space=vmem, size = 0x8000, scoped, tag = 'input window, operand 2, single buffered']
    #allocation8 [shape = 'u8[32768]{0}', space=vmem, size = 0x8000, scoped, tag = 'input window, operand 3, single buffered']
    #allocation9 [shape = 's32[1]{0}', space=sflag, size = 0x4, scoped, tag = 'scoped memory for tpu_custom_call.1']
    #allocation10 [shape = 'u8[4096]{0}', space=vmem, size = 0x1000, scoped, tag = 'output window, operand 0, single buffered']
    %10 = vsyncpa [#allocation3], 0
    %11 = vsyncpa [#allocation6], 0
    %12 = vsyncpa [#allocation9], 0
    %13 = vsyncpa [#allocation4], 0
    // Predicated region
    $region2: #{tpu_custom_call.1} parent=1 // pred_check
      _
    $region3: #{tpu_custom_call.1} parent=1 // pred_check_branch
      %15 = sbr.rel (0) target = $region5
    $region4: #{tpu_custom_call.1} parent=1 // pred_region
      %s17 = ssub.s32 128, 128
      %18 = vsyncadd [#allocation3], %s17
      %s20 = sshll.u32 [#allocation2], 4
      %s21 = int_to_ptr.vmem [resolvable:$true] %s20
      %23 = dma.hbm_to_vmem [thread:$0]  %s0, 128, %s21, [#allocation3]
    $region5: #{tpu_custom_call.1} parent=1 // pred_fallthru
      _
    // Predicated region
    $region6: #{tpu_custom_call.1} parent=1 // pred_check
      _
    $region7: #{tpu_custom_call.1} parent=1 // pred_check_branch
      %25 = sbr.rel (0) target = $region9
    $region8: #{tpu_custom_call.1} parent=1 // pred_region
      %s27 = ssub.s32 128, 128
      %28 = vsyncadd [#allocation6], %s27
      %s29 = sshll.u32 [#allocation5], 4
      %s30 = int_to_ptr.vmem [resolvable:$true] %s29
      %35 = dma.hbm_to_vmem [thread:$0]  %s1, 128, %s30, [#allocation6], 64, 64, 4
    $region9: #{tpu_custom_call.1} parent=1 // pred_fallthru
      _
    // Predicated region
    $region10: #{tpu_custom_call.1} parent=1 // pred_check
      _
    $region11: #{tpu_custom_call.1} parent=1 // pred_check_branch
      %37 = sbr.rel (0) target = $region13
    $region12: #{tpu_custom_call.1} parent=1 // pred_region
      %s39 = ssub.s32 1024, 1024
      %40 = vsyncadd [#allocation6], %s39
      %s41 = sshll.u32 [#allocation7], 4
      %s42 = int_to_ptr.vmem [resolvable:$true] %s41
      %47 = dma.hbm_to_vmem [thread:$0]  %s2, 1024, %s42, [#allocation6], 64, 64, 4
    $region13: #{tpu_custom_call.1} parent=1 // pred_fallthru
      _
    // Predicated region
    $region14: #{tpu_custom_call.1} parent=1 // pred_check
      _
    $region15: #{tpu_custom_call.1} parent=1 // pred_check_branch
      %49 = sbr.rel (0) target = $region17
    $region16: #{tpu_custom_call.1} parent=1 // pred_region
      %s51 = ssub.s32 1024, 1024
      %52 = vsyncadd [#allocation9], %s51
      %s53 = sshll.u32 [#allocation8], 4
      %s54 = int_to_ptr.vmem [resolvable:$true] %s53
      %59 = dma.hbm_to_vmem [thread:$0]  %s3, 1024, %s54, [#allocation9], 64, 64, 4
    $region17: #{tpu_custom_call.1} parent=1 // pred_fallthru
      _
    // Predicated region
    $region18: #{tpu_custom_call.1} parent=1 // pred_check
      _
    $region19: #{tpu_custom_call.1} parent=1 // pred_check_branch
      %61 = sbr.rel (0) target = $region21
    $region20: #{tpu_custom_call.1} parent=1 // pred_region
      _
    $region21: #{tpu_custom_call.1} parent=1 // pred_fallthru
      _
    // Predicated region
    $region22: #{tpu_custom_call.1} parent=1 // pred_check
      _
    $region23: #{tpu_custom_call.1} parent=1 // pred_check_branch
      %63 = sbr.rel (0) target = $region25
    $region24: #{tpu_custom_call.1} parent=1 // pred_region
      %64 = dma.done [#allocation3], 128
    $region25: #{tpu_custom_call.1} parent=1 // pred_fallthru
      _
    // Predicated region
    $region26: #{tpu_custom_call.1} parent=1 // pred_check
      _
    $region27: #{tpu_custom_call.1} parent=1 // pred_check_branch
      %66 = sbr.rel (0) target = $region29
    $region28: #{tpu_custom_call.1} parent=1 // pred_region
      %67 = dma.done [#allocation6], 128
    $region29: #{tpu_custom_call.1} parent=1 // pred_fallthru
      _
    // Predicated region
    $region30: #{tpu_custom_call.1} parent=1 // pred_check
      _
    $region31: #{tpu_custom_call.1} parent=1 // pred_check_branch
      %69 = sbr.rel (0) target = $region33
    $region32: #{tpu_custom_call.1} parent=1 // pred_region
      %70 = dma.done [#allocation6], 1024
    $region33: #{tpu_custom_call.1} parent=1 // pred_fallthru
      _
    // Predicated region
    $region34: #{tpu_custom_call.1} parent=1 // pred_check
      _
    $region35: #{tpu_custom_call.1} parent=1 // pred_check_branch
      %72 = sbr.rel (0) target = $region37
    $region36: #{tpu_custom_call.1} parent=1 // pred_region
      %73 = dma.done [#allocation9], 1024
    $region37: #{tpu_custom_call.1} parent=1 // pred_fallthru
      _
    %v75 = vld [vmem:[#allocation2] sm:$0xff]
    %v76 = vpack.c.bf16 %v75, %v75
    %v77 = vld [vmem:[%s4] sm:$0x1]
    %v78 = vld [vmem:[%s4 + $0x1] sm:$0x1]
    %v79 = vld [vmem:[%s4 + $0x2] sm:$0x1]
    %v80 = vld [vmem:[#allocation5] sm:$0xf]
    %v81 = vld [vmem:[#allocation5 + $0x4] sm:$0xf]
    %v82 = vlaneseq
    %v83 = vshrl.u32 %v82, 7
    %v84 = vsub.s32 0, %v83
    %v85 = vrot.slane %v77, %v84
    %v88 = vunpack.c.l.b16 %v80
    %v89 = vunpack.c.l.b16 %v81
    %v90 = vpack.c.b16 %v89, %v88
    %vm92 = vcmask 130048
    %v94 = vsel %vm92, %v76, 0
    %96 = vmatprep.subr.bf16.mxu0 0
    %97 = vmatpush1.bf16.msra.mxu0 %v90
    %98 = vmatprep.subr.bf16.mxu0 0
    %99 = vmatpush1.bf16.msra.mxu0 0
    %100 = vmatprep.subr.bf16.mxu0 0
    %101 = vmatpush1.bf16.msra.mxu0 0
    %102 = vmatprep.subr.bf16.mxu0 0
    %103 = vmatpush1.bf16.msra.mxu0 0
    %104 = vmatprep.subr.bf16.mxu0 0
    %105 = vmatpush1.bf16.msra.mxu0 0
    %106 = vmatprep.subr.bf16.mxu0 0
    %107 = vmatpush1.bf16.msra.mxu0 0
    %108 = vmatprep.subr.bf16.mxu0 0
    %109 = vmatpush1.bf16.msra.mxu0 0
    %110 = vmatprep.subr.bf16.mxu0 0
    %111 = vmatpush1.bf16.msra.mxu0 0
    %112 = vmatprep.subr.bf16.mxu0 0
    %113 = vmatpush1.bf16.msra.mxu0 0
    %114 = vmatprep.subr.bf16.mxu0 0
    %115 = vmatpush1.bf16.msra.mxu0 0
    %116 = vmatprep.subr.bf16.mxu0 0
    %117 = vmatpush1.bf16.msra.mxu0 0
    %118 = vmatprep.subr.bf16.mxu0 0
    %119 = vmatpush1.bf16.msra.mxu0 0
    %120 = vmatprep.subr.bf16.mxu0 0
    %121 = vmatpush1.bf16.msra.mxu0 0
    %122 = vmatprep.subr.bf16.mxu0 0
    %123 = vmatpush1.bf16.msra.mxu0 0
    %124 = vmatprep.subr.bf16.mxu0 0
    %125 = vmatpush1.bf16.msra.mxu0 0
    %126 = vmatprep.subr.bf16.mxu0 0
    %127 = vmatpush1.bf16.msra.mxu0 0
    %128 = vmatprep.mubr.bf16.mxu0 0
    %129 = vmatmul.mubr.bf16.gmra.mrb[0].mxu0 %v94
    %v130 = vpop.f32.mrb[0].mxu0
    %v131 = vadd.f32 %v85, %v130
    %v132 = vpop.f32.mrb[0].mxu0
    %v133 = vpop.f32.mrb[0].mxu0
    %v134 = vpop.f32.mrb[0].mxu0
    %135 = vdwg.mxu0
    %v136 = vmax.f32 %v131, 0.0
    %v137 = vpack.c.bf16 %v136, %v136
    %v138 = vld [vmem:[#allocation7] sm:$0xf]
    %v139 = vld [vmem:[#allocation7 + $0x4] sm:$0xf]
    %v140 = vld [vmem:[#allocation7 + $0x8] sm:$0xf]
    %v141 = vld [vmem:[#allocation7 + $0xc] sm:$0xf]
    %v142 = vld [vmem:[#allocation7 + $0x10] sm:$0xf]
    %v143 = vld [vmem:[#allocation7 + $0x14] sm:$0xf]
    %v144 = vld [vmem:[#allocation7 + $0x18] sm:$0xf]
    %v145 = vld [vmem:[#allocation7 + $0x1c] sm:$0xf]
    %v146 = vld [vmem:[#allocation7 + $0x20] sm:$0xf]
    %v147 = vld [vmem:[#allocation7 + $0x24] sm:$0xf]
    %v148 = vld [vmem:[#allocation7 + $0x28] sm:$0xf]
    %v149 = vld [vmem:[#allocation7 + $0x2c] sm:$0xf]
    %v150 = vld [vmem:[#allocation7 + $0x30] sm:$0xf]
    %v151 = vld [vmem:[#allocation7 + $0x34] sm:$0xf]
    %v152 = vld [vmem:[#allocation7 + $0x38] sm:$0xf]
    %v153 = vld [vmem:[#allocation7 + $0x3c] sm:$0xf]
    %v154 = vlaneseq
    %v155 = vshrl.u32 %v154, 7
    %v156 = vsub.s32 0, %v155
    %v157 = vrot.slane %v78, %v156
    %v174 = vunpack.c.l.b16 %v138
    %v175 = vunpack.c.l.b16 %v139
    %v176 = vunpack.c.l.b16 %v140
    %v177 = vunpack.c.l.b16 %v141
    %v178 = vunpack.c.l.b16 %v142
    %v179 = vunpack.c.l.b16 %v143
    %v180 = vunpack.c.l.b16 %v144
    %v181 = vunpack.c.l.b16 %v145
    %v182 = vunpack.c.l.b16 %v146
    %v183 = vunpack.c.l.b16 %v147
    %v184 = vunpack.c.l.b16 %v148
    %v185 = vunpack.c.l.b16 %v149
    %v186 = vunpack.c.l.b16 %v150
    %v187 = vunpack.c.l.b16 %v151
    %v188 = vunpack.c.l.b16 %v152
    %v189 = vunpack.c.l.b16 %v153
    %v190 = vpack.c.b16 %v175, %v174
    %v191 = vpack.c.b16 %v177, %v176
    %v192 = vpack.c.b16 %v179, %v178
    %v193 = vpack.c.b16 %v181, %v180
    %v194 = vpack.c.b16 %v183, %v182
    %v195 = vpack.c.b16 %v185, %v184
    %v196 = vpack.c.b16 %v187, %v186
    %v197 = vpack.c.b16 %v189, %v188
    %206 = vmatprep.subr.bf16.mxu0 0
    %207 = vmatpush1.bf16.msra.mxu0 %v190
    %208 = vmatprep.subr.bf16.mxu0 0
    %209 = vmatpush1.bf16.msra.mxu0 %v191
    %210 = vmatprep.subr.bf16.mxu0 0
    %211 = vmatpush1.bf16.msra.mxu0 %v192
    %212 = vmatprep.subr.bf16.mxu0 0
    %213 = vmatpush1.bf16.msra.mxu0 %v193
    %214 = vmatprep.subr.bf16.mxu0 0
    %215 = vmatpush1.bf16.msra.mxu0 %v194
    %216 = vmatprep.subr.bf16.mxu0 0
    %217 = vmatpush1.bf16.msra.mxu0 %v195
    %218 = vmatprep.subr.bf16.mxu0 0
    %219 = vmatpush1.bf16.msra.mxu0 %v196
    %220 = vmatprep.subr.bf16.mxu0 0
    %221 = vmatpush1.bf16.msra.mxu0 %v197
    %222 = vmatprep.subr.bf16.mxu0 0
    %223 = vmatpush1.bf16.msra.mxu0 0
    %224 = vmatprep.subr.bf16.mxu0 0
    %225 = vmatpush1.bf16.msra.mxu0 0
    %226 = vmatprep.subr.bf16.mxu0 0
    %227 = vmatpush1.bf16.msra.mxu0 0
    %228 = vmatprep.subr.bf16.mxu0 0
    %229 = vmatpush1.bf16.msra.mxu0 0
    %230 = vmatprep.subr.bf16.mxu0 0
    %231 = vmatpush1.bf16.msra.mxu0 0
    %232 = vmatprep.subr.bf16.mxu0 0
    %233 = vmatpush1.bf16.msra.mxu0 0
    %234 = vmatprep.subr.bf16.mxu0 0
    %235 = vmatpush1.bf16.msra.mxu0 0
    %236 = vmatprep.subr.bf16.mxu0 0
    %237 = vmatpush1.bf16.msra.mxu0 0
    %238 = vmatprep.mubr.bf16.mxu0 0
    %239 = vmatmul.mubr.bf16.gmra.mrb[0].mxu0 %v137
    %v240 = vpop.f32.mrb[0].mxu0
    %v241 = vadd.f32 %v157, %v240
    %v242 = vpop.f32.mrb[0].mxu0
    %v243 = vpop.f32.mrb[0].mxu0
    %v244 = vpop.f32.mrb[0].mxu0
    %245 = vdwg.mxu0
    %v246 = vmax.f32 %v241, 0.0
    %v247 = vpack.c.bf16 %v246, %v246
    %v248 = vld [vmem:[#allocation8] sm:$0xf]
    %v249 = vld [vmem:[#allocation8 + $0x4] sm:$0xf]
    %v250 = vld [vmem:[#allocation8 + $0x8] sm:$0xf]
    %v251 = vld [vmem:[#allocation8 + $0xc] sm:$0xf]
    %v252 = vld [vmem:[#allocation8 + $0x10] sm:$0xf]
    %v253 = vld [vmem:[#allocation8 + $0x14] sm:$0xf]
    %v254 = vld [vmem:[#allocation8 + $0x18] sm:$0xf]
    %v255 = vld [vmem:[#allocation8 + $0x1c] sm:$0xf]
    %v256 = vld [vmem:[#allocation8 + $0x20] sm:$0xf]
    %v257 = vld [vmem:[#allocation8 + $0x24] sm:$0xf]
    %v258 = vld [vmem:[#allocation8 + $0x28] sm:$0xf]
    %v259 = vld [vmem:[#allocation8 + $0x2c] sm:$0xf]
    %v260 = vld [vmem:[#allocation8 + $0x30] sm:$0xf]
    %v261 = vld [vmem:[#allocation8 + $0x34] sm:$0xf]
    %v262 = vld [vmem:[#allocation8 + $0x38] sm:$0xf]
    %v263 = vld [vmem:[#allocation8 + $0x3c] sm:$0xf]
    %v264 = vlaneseq
    %v265 = vshrl.u32 %v264, 7
    %v266 = vsub.s32 0, %v265
    %v267 = vrot.slane %v79, %v266
    %v284 = vunpack.c.l.b16 %v248
    %v285 = vunpack.c.l.b16 %v249
    %v286 = vunpack.c.l.b16 %v250
    %v287 = vunpack.c.l.b16 %v251
    %v288 = vunpack.c.l.b16 %v252
    %v289 = vunpack.c.l.b16 %v253
    %v290 = vunpack.c.l.b16 %v254
    %v291 = vunpack.c.l.b16 %v255
    %v292 = vunpack.c.l.b16 %v256
    %v293 = vunpack.c.l.b16 %v257
    %v294 = vunpack.c.l.b16 %v258
    %v295 = vunpack.c.l.b16 %v259
    %v296 = vunpack.c.l.b16 %v260
    %v297 = vunpack.c.l.b16 %v261
    %v298 = vunpack.c.l.b16 %v262
    %v299 = vunpack.c.l.b16 %v263
    %v300 = vpack.c.b16 %v285, %v284
    %v301 = vpack.c.b16 %v287, %v286
    %v302 = vpack.c.b16 %v289, %v288
    %v303 = vpack.c.b16 %v291, %v290
    %v304 = vpack.c.b16 %v293, %v292
    %v305 = vpack.c.b16 %v295, %v294
    %v306 = vpack.c.b16 %v297, %v296
    %v307 = vpack.c.b16 %v299, %v298
    %316 = vmatprep.subr.bf16.mxu0 0
    %317 = vmatpush1.bf16.msra.mxu0 %v300
    %318 = vmatprep.subr.bf16.mxu0 0
    %319 = vmatpush1.bf16.msra.mxu0 %v301
    %320 = vmatprep.subr.bf16.mxu0 0
    %321 = vmatpush1.bf16.msra.mxu0 %v302
    %322 = vmatprep.subr.bf16.mxu0 0
    %323 = vmatpush1.bf16.msra.mxu0 %v303
    %324 = vmatprep.subr.bf16.mxu0 0
    %325 = vmatpush1.bf16.msra.mxu0 %v304
    %326 = vmatprep.subr.bf16.mxu0 0
    %327 = vmatpush1.bf16.msra.mxu0 %v305
    %328 = vmatprep.subr.bf16.mxu0 0
    %329 = vmatpush1.bf16.msra.mxu0 %v306
    %330 = vmatprep.subr.bf16.mxu0 0
    %331 = vmatpush1.bf16.msra.mxu0 %v307
    %332 = vmatprep.subr.bf16.mxu0 0
    %333 = vmatpush1.bf16.msra.mxu0 0
    %334 = vmatprep.subr.bf16.mxu0 0
    %335 = vmatpush1.bf16.msra.mxu0 0
    %336 = vmatprep.subr.bf16.mxu0 0
    %337 = vmatpush1.bf16.msra.mxu0 0
    %338 = vmatprep.subr.bf16.mxu0 0
    %339 = vmatpush1.bf16.msra.mxu0 0
    %340 = vmatprep.subr.bf16.mxu0 0
    %341 = vmatpush1.bf16.msra.mxu0 0
    %342 = vmatprep.subr.bf16.mxu0 0
    %343 = vmatpush1.bf16.msra.mxu0 0
    %344 = vmatprep.subr.bf16.mxu0 0
    %345 = vmatpush1.bf16.msra.mxu0 0
    %346 = vmatprep.subr.bf16.mxu0 0
    %347 = vmatpush1.bf16.msra.mxu0 0
    %348 = vmatprep.mubr.bf16.mxu0 0
    %349 = vmatmul.mubr.bf16.gmra.mrb[0].mxu0 %v247
    %v350 = vpop.f32.mrb[0].mxu0
    %v351 = vadd.f32 %v267, %v350
    %v352 = vpop.f32.mrb[0].mxu0
    %v353 = vpop.f32.mrb[0].mxu0
    %v354 = vpop.f32.mrb[0].mxu0
    %355 = vdwg.mxu0
    %356 = vst [vmem:[#allocation10] sm:$0xff] %v351
    // Predicated region
    $region38: #{tpu_custom_call.1} parent=1 // pred_check
      _
    $region39: #{tpu_custom_call.1} parent=1 // pred_check_branch
      %358 = sbr.rel (0) target = $region41
    $region40: #{tpu_custom_call.1} parent=1 // pred_region
      %s360 = ssub.s32 128, 128
      %361 = vsyncadd [#allocation4], %s360
      %s363 = sshll.u32 [#allocation10], 4
      %s364 = int_to_ptr.vmem [resolvable:$true] %s363
      %366 = dma.vmem_to_hbm [thread:$0]  %s364, 128, %s5, [#allocation4]
    $region41: #{tpu_custom_call.1} parent=1 // pred_fallthru
      _
    // Predicated region
    $region42: #{tpu_custom_call.1} parent=1 // pred_check
      _
    $region43: #{tpu_custom_call.1} parent=1 // pred_check_branch
      %368 = sbr.rel (0) target = $region45
    $region44: #{tpu_custom_call.1} parent=1 // pred_region
      %369 = dma.done [#allocation4], 128
    $region45: #{tpu_custom_call.1} parent=1 // pred_fallthru
      _
    %370 = vsyncpa [#allocation3], 1
    %371 = vsyncpa [#allocation6], 1
    %372 = vsyncpa [#allocation9], 1
    %373 = vsyncpa [#allocation4], 1

</llo_original>
